<compile_context>
chip_gen: v6e
topology: v6e:2x2x1
jax: 0.10.0
libtpu: 0.0.40
codegen_flags: <defaults>
</compile_context>

<pallas_src>
import functools

import jax
import jax.numpy as jnp
from jax.experimental import pallas as pl
from jax.experimental.pallas import tpu as pltpu

N_FEATURES = 16
N_LANDCOVER = 4
M_ENV_FACTORS = min(300, N_FEATURES - N_LANDCOVER)   # = 12
BATCH = 16
_LANE = 128


def entropy_kernel(k_ref, bias_ref, alpha_ref, x_ref, o_ref):
    x = x_ref[...]            # (N, tb)  features on sublanes, batch on lanes
    bias = bias_ref[...]      # (N, 1)   0 on landcover rows, -1e30 on env rows
    alpha = alpha_ref[...]    # (N, 1)   0 on landcover rows, alpha on env rows
    k = k_ref[0, 0]           # learned scalar (SMEM)

    # masked softmax statistics over the landcover rows (sublane reductions)
    x_lc = x + bias                                   # env rows -> ~ -1e30
    m = jnp.max(x_lc, axis=0, keepdims=True)          # (1, tb)
    xs = x_lc - m
    e = jnp.exp(xs)                                   # env rows: exp(-big) = 0
    denom = jnp.sum(e, axis=0, keepdims=True)         # (1, tb)

    # sum_i p_i * log p_i  (env rows contribute exactly 0: e = 0, 0*finite = 0)
    s_ex = jnp.sum(e * xs, axis=0, keepdims=True)     # (1, tb)
    sum_plogp = s_ex / denom - jnp.log(denom)         # one div + one log / row

    env = jnp.sum(alpha * x, axis=0, keepdims=True)   # (1, tb)
    o_ref[...] = (env - k * sum_plogp).astype(o_ref.dtype)


def _round_up(a, b):
    return (a + b - 1) // b * b


def _pick_tile(B):
    b128 = _round_up(max(B, _LANE), _LANE)
    if b128 <= 1024:
        return b128, b128                 # small batch: single grid step
    # ~512 KiB f32 input blocks, but keep >= 2 grid steps (v7x has 2 TCs)
    half = _round_up((b128 + 1) // 2, _LANE)
    tb = min(8192, half)
    return tb, _round_up(B, tb)


@jax.jit
def entropy_forward(x, k, alpha):
    """x: (B, n_features) f32, k: (1,) f32, alpha: (m_env,) f32 -> (B, 1) f32."""
    B, N = x.shape
    n_lc = min(N_LANDCOVER, N)
    f_j = N - n_lc

    tb, Bp = _pick_tile(B)

    # lane-dense layout: batch on lanes, features on sublanes
    xt = x.astype(jnp.float32).T                                  # (N, B)
    if Bp != B:
        xt = jnp.pad(xt, ((0, 0), (0, Bp - B)))

    # pack-time parameter columns (trace-time JAX, zero in-kernel cost)
    alpha_col = jnp.concatenate(
        [jnp.zeros((n_lc,), jnp.float32),
         alpha[:f_j].astype(jnp.float32)])[:, None]               # (N, 1)
    bias_col = jnp.concatenate(
        [jnp.zeros((n_lc,), jnp.float32),
         jnp.full((f_j,), -1e30, jnp.float32)])[:, None]          # (N, 1)
    k_smem = k.reshape(1, 1).astype(jnp.float32)                  # (1, 1)

    out = pl.pallas_call(
        entropy_kernel,
        out_shape=jax.ShapeDtypeStruct((1, Bp), jnp.float32),
        grid=(Bp // tb,),
        in_specs=[
            pl.BlockSpec(memory_space=pltpu.MemorySpace.SMEM),    # k
            pl.BlockSpec((N, 1), lambda i: (0, 0)),               # bias col
            pl.BlockSpec((N, 1), lambda i: (0, 0)),               # alpha col
            pl.BlockSpec((N, tb), lambda i: (0, i)),              # x tile
        ],
        out_specs=pl.BlockSpec((1, tb), lambda i: (0, i)),        # lane-dense
        compiler_params=pltpu.CompilerParams(
            dimension_semantics=("parallel",)),
    )(k_smem, bias_col, alpha_col, xt)

    return out[0, :B][:, None]


def ref_forward(x, k, alpha, n_landcover=N_LANDCOVER):
    """Pure-JAX reference mirroring the PyTorch EntropyLayer.forward."""
    n_features = x.shape[1]
    n_lc = min(n_landcover, n_features)
    p_i = jax.nn.softmax(x[:, :n_lc], axis=-1)
    f_j = x[:, n_lc:]
    alpha_adj = alpha[: f_j.shape[1]]
    entropy_term = -k[0] * jnp.sum(p_i * jnp.log(p_i + 1e-10), axis=-1)
    env_term = jnp.sum(alpha_adj * f_j, axis=-1)
    return (entropy_term + env_term)[:, None]


if __name__ == "__main__":
    key = jax.random.PRNGKey(0)
    kx, kk, ka, kx2 = jax.random.split(key, 4)

    x = jax.random.normal(kx, (BATCH, N_FEATURES), jnp.float32)
    k_param = 1.0 + 0.1 * jax.random.normal(kk, (1,), jnp.float32)
    alpha_param = 1.0 + 0.1 * jax.random.normal(ka, (M_ENV_FACTORS,), jnp.float32)

    # small-batch (single grid step) path
    y = entropy_forward(x, k_param, alpha_param)
    jax.block_until_ready(y)
    y_ref = ref_forward(x, k_param, alpha_param)
    assert y.shape == (BATCH, 1), y.shape
    assert jnp.allclose(y, y_ref, atol=1e-4, rtol=1e-4)

    # multi-step tiled path (exercises the parallel grid / padding slice-off)
    x2 = jax.random.normal(kx2, (2048, N_FEATURES), jnp.float32)
    y2 = entropy_forward(x2, k_param, alpha_param)
    jax.block_until_ready(y2)
    y2_ref = ref_forward(x2, k_param, alpha_param)
    assert y2.shape == (2048, 1), y2.shape
    assert jnp.allclose(y2, y2_ref, atol=1e-4, rtol=1e-4)

    print("KERNEL_OK")
</pallas_src>

<mosaic_0001>
module attributes {stable_mosaic.version = 11 : i64} {
  func.func @entropy_kernel(%arg0: i32, %arg1: memref<1x1xf32, #tpu.memory_space<smem>>, %arg2: memref<16x1xf32, #tpu.memory_space<vmem>>, %arg3: memref<16x1xf32, #tpu.memory_space<vmem>>, %arg4: memref<16x128xf32, #tpu.memory_space<vmem>>, %arg5: memref<1x128xf32, #tpu.memory_space<vmem>>) attributes {dimension_semantics = [#tpu.dimension_semantics<parallel>], iteration_bounds = array<i64: 1>, scalar_prefetch = 0 : i64, scratch_operands = 0 : i64, tpu.core_type = #tpu.core_type<tc>, window_params = [{transform_indices = @transform_0, window_bounds = array<i64: 1, 1>}, {pipeline_mode = #tpu.pipeline_mode<synchronous>, transform_indices = @transform_1, window_bounds = array<i64: 16, 1>}, {pipeline_mode = #tpu.pipeline_mode<synchronous>, transform_indices = @transform_2, window_bounds = array<i64: 16, 1>}, {transform_indices = @transform_3, window_bounds = array<i64: 16, 128>}, {transform_indices = @transform_4, window_bounds = array<i64: 1, 128>}]} {
    %c0 = arith.constant 0 : index
    %c0_0 = arith.constant 0 : index
    %0 = vector.load %arg4[%c0, %c0_0] : memref<16x128xf32, #tpu.memory_space<vmem>>, vector<16x128xf32>
    %c0_1 = arith.constant 0 : index
    %c0_2 = arith.constant 0 : index
    %1 = vector.load %arg2[%c0_1, %c0_2] : memref<16x1xf32, #tpu.memory_space<vmem>>, vector<16x1xf32>
    %c0_3 = arith.constant 0 : index
    %c0_4 = arith.constant 0 : index
    %2 = vector.load %arg3[%c0_3, %c0_4] : memref<16x1xf32, #tpu.memory_space<vmem>>, vector<16x1xf32>
    %c0_5 = arith.constant 0 : index
    %c0_6 = arith.constant 0 : index
    %3 = memref.load %arg1[%c0_5, %c0_6] : memref<1x1xf32, #tpu.memory_space<smem>>
    %4 = vector.broadcast %1 : vector<16x1xf32> to vector<16x128xf32>
    %5 = arith.addf %0, %4 : vector<16x128xf32>
    %cst = arith.constant dense<0xFF800000> : vector<128xf32>
    %6 = vector.multi_reduction <maximumf>, %5, %cst [0] : vector<16x128xf32> to vector<128xf32>
    %7 = vector.shape_cast %6 : vector<128xf32> to vector<1x128xf32>
    %8 = vector.broadcast %7 : vector<1x128xf32> to vector<16x128xf32>
    %9 = arith.subf %5, %8 : vector<16x128xf32>
    %10 = math.exp %9 : vector<16x128xf32>
    %cst_7 = arith.constant dense<0.000000e+00> : vector<128xf32>
    %11 = vector.multi_reduction <add>, %10, %cst_7 [0] : vector<16x128xf32> to vector<128xf32>
    %12 = vector.shape_cast %11 : vector<128xf32> to vector<1x128xf32>
    %13 = arith.mulf %10, %9 : vector<16x128xf32>
    %cst_8 = arith.constant dense<0.000000e+00> : vector<128xf32>
    %14 = vector.multi_reduction <add>, %13, %cst_8 [0] : vector<16x128xf32> to vector<128xf32>
    %15 = vector.shape_cast %14 : vector<128xf32> to vector<1x128xf32>
    %16 = arith.divf %15, %12 : vector<1x128xf32>
    %17 = math.log %12 : vector<1x128xf32>
    %18 = arith.subf %16, %17 : vector<1x128xf32>
    %19 = vector.broadcast %2 : vector<16x1xf32> to vector<16x128xf32>
    %20 = arith.mulf %19, %0 : vector<16x128xf32>
    %cst_9 = arith.constant dense<0.000000e+00> : vector<128xf32>
    %21 = vector.multi_reduction <add>, %20, %cst_9 [0] : vector<16x128xf32> to vector<128xf32>
    %22 = vector.shape_cast %21 : vector<128xf32> to vector<1x128xf32>
    %23 = vector.broadcast %3 : f32 to vector<1x128xf32>
    %24 = arith.mulf %23, %18 : vector<1x128xf32>
    %25 = arith.subf %22, %24 : vector<1x128xf32>
    %c0_10 = arith.constant 0 : index
    %c0_11 = arith.constant 0 : index
    %26 = vector.load %arg5[%c0_10, %c0_11] : memref<1x128xf32, #tpu.memory_space<vmem>>, vector<1x128xf32>
    tpu.vector_store %arg5[%c0_10, %c0_11], %25 {strides = array<i32>} : memref<1x128xf32, #tpu.memory_space<vmem>>, vector<1x128xf32>,
    return
  }
  func.func @transform_0(%arg0: i32) -> (i32, i32) {
    %c0_i32 = arith.constant 0 : i32
    %c0_i32_0 = arith.constant 0 : i32
    %c0_i32_1 = arith.constant 0 : i32
    return %c0_i32, %c0_i32_0 : i32, i32
  }
  func.func @transform_1(%arg0: i32) -> (i32, i32) {
    %c0_i32 = arith.constant 0 : i32
    %c0_i32_0 = arith.constant 0 : i32
    %c0_i32_1 = arith.constant 0 : i32
    return %c0_i32, %c0_i32_0 : i32, i32
  }
  func.func @transform_2(%arg0: i32) -> (i32, i32) {
    %c0_i32 = arith.constant 0 : i32
    %c0_i32_0 = arith.constant 0 : i32
    %c0_i32_1 = arith.constant 0 : i32
    return %c0_i32, %c0_i32_0 : i32, i32
  }
  func.func @transform_3(%arg0: i32) -> (i32, i32) {
    %c0_i32 = arith.constant 0 : i32
    %c0_i32_0 = arith.constant 0 : i32
    return %c0_i32, %arg0 : i32, i32
  }
  func.func @transform_4(%arg0: i32) -> (i32, i32) {
    %c0_i32 = arith.constant 0 : i32
    %c0_i32_0 = arith.constant 0 : i32
    return %c0_i32, %arg0 : i32, i32
  }
}

</mosaic_0001>

<llo_original>
// kernel: entropy_forward.1
$region0: #{entropy_forward.1}
  #allocation0 [shape = 'u32[]', space=smem, size = 0x4, offset = 0x4, fixed_abs, tag = 'smem constant byte address 0x4 - core index']
  #allocation1 [shape = 'u32[144,128]{1,0:T(1,128)}', space=vmem, size = 0x12000, scoped, tag = 'internal scratch']
  #allocation2 [shape = 'f32[1,1]{1,0:T(1,128)S(6)}', space=smem, size = 0x200, scoped, tag = 'scoped memory for entropy_forward.1']
  %s0 = inlined_call_operand.<no memory space> [shape: f32[1,1], index: 0, kind: input, shape index: {}]
  %s1 = inlined_call_operand.vmem [shape: f32[16,1], index: 1, kind: input, shape index: {}]
  %s2 = inlined_call_operand.vmem [shape: f32[16,1], index: 2, kind: input, shape index: {}]
  %s3 = inlined_call_operand.vmem [shape: f32[16,128], index: 3, kind: input, shape index: {}]
  %s4 = inlined_call_operand.vmem [shape: f32[1,128], index: 4, kind: output, shape index: {}]
  %s5 = sld [smem:[#allocation0]]
  $region26: #{entropy_forward.1} parent=0
    _
  %s7 = ssub.s32 1, %s5
  %s8 = scalar_select 0, %s7, %s5
  %9 = sst [smem:[#allocation2]] %s0
  // Predicated region
  $region2: #{entropy_forward.1} parent=0 // pred_check
    _
  $region3: #{entropy_forward.1} parent=0 // pred_check_branch
    %11 = sbr.rel (0) target = $region5
  $region4: #{entropy_forward.1} parent=0 // pred_region
    _
  $region5: #{entropy_forward.1} parent=0 // pred_fallthru
    _
  // Predicated region
  $region6: #{entropy_forward.1} parent=0 // pred_check
    _
  $region7: #{entropy_forward.1} parent=0 // pred_check_branch
    %13 = sbr.rel (0) target = $region9
  $region8: #{entropy_forward.1} parent=0 // pred_region
    _
  $region9: #{entropy_forward.1} parent=0 // pred_fallthru
    _
  // Predicated region
  $region10: #{entropy_forward.1} parent=0 // pred_check
    _
  $region11: #{entropy_forward.1} parent=0 // pred_check_branch
    %15 = sbr.rel (0) target = $region13
  $region12: #{entropy_forward.1} parent=0 // pred_region
    _
  $region13: #{entropy_forward.1} parent=0 // pred_fallthru
    _
  // Predicated region
  $region14: #{entropy_forward.1} parent=0 // pred_check
    _
  $region15: #{entropy_forward.1} parent=0 // pred_check_branch
    %17 = sbr.rel (0) target = $region17
  $region16: #{entropy_forward.1} parent=0 // pred_region
    _
  $region17: #{entropy_forward.1} parent=0 // pred_fallthru
    _
  %v18 = vld [vmem:[%s3] sm:$0xff]
  %v19 = vld [vmem:[%s3 + $0x8] sm:$0xff]
  %v20 = vld [vmem:[%s1] sm:$0xff]
  %v21 = vld [vmem:[%s1 + $0x8] sm:$0xff]
  %v22 = vld [vmem:[%s2] sm:$0xff]
  %v23 = vld [vmem:[%s2 + $0x8] sm:$0xff]
  %s24 = sld [smem:[#allocation2]]
  %26 = vset.pattern.permute.xlu0 0
  %27 = vperm.xlu0 %26, %v20
  %v28 = vpop.permute.xlu0 %27
  %31 = vset.pattern.permute.xlu0 0
  %32 = vperm.xlu0 %31, %v21
  %v33 = vpop.permute.xlu0 %32
  %v35 = vadd.f32 %v18, %v28
  %v36 = vadd.f32 %v19, %v33
  %v37 = vmax.f32 %v35, %v36
  %v38 = vrot.slane %v37, 4
  %v39 = vmax.f32 %v37, %v38
  %v40 = vrot.slane %v39, 2
  %v41 = vmax.f32 %v39, %v40
  %v42 = vrot.slane %v41, 1
  %v43 = vmax.f32 %v41, %v42
  %v44 = vsub.f32 %v35, %v43
  %v45 = vsub.f32 %v36, %v43
  %v46 = vmul.f32 %v44, 1.442695
  %v47 = vpow.pop %v46
  %v48 = vmul.f32 %v45, 1.442695
  %v49 = vpow.pop %v48
  %v50 = vadd.f32 %v47, %v49
  %v51 = vrot.slane %v50, 4
  %v52 = vadd.f32 %v50, %v51
  %v53 = vrot.slane %v52, 2
  %v54 = vadd.f32 %v52, %v53
  %v55 = vrot.slane %v54, 1
  %v56 = vadd.f32 %v54, %v55
  %v57 = vmul.f32 %v47, %v44
  %v58 = vmul.f32 %v49, %v45
  %v59 = vadd.f32 %v57, %v58
  %v60 = vrot.slane %v59, 4
  %v61 = vadd.f32 %v59, %v60
  %v62 = vrot.slane %v61, 2
  %v63 = vadd.f32 %v61, %v62
  %v64 = vrot.slane %v63, 1
  %v65 = vadd.f32 %v63, %v64
  %v66 = vrcp.pop %v56
  %v67 = vmul.f32 %v65, %v66
  %v68 = vlog2.pop %v56
  %v69 = vmul.f32 %v68, 0.6931472
  %v70 = vsub.f32 %v67, %v69
  %72 = vset.pattern.permute.xlu0 0
  %73 = vperm.xlu0 %72, %v22
  %v74 = vpop.permute.xlu0 %73
  %77 = vset.pattern.permute.xlu0 0
  %78 = vperm.xlu0 %77, %v23
  %v79 = vpop.permute.xlu0 %78
  %v81 = vmul.f32 %v74, %v18
  %v82 = vmul.f32 %v79, %v19
  %v83 = vadd.f32 %v81, %v82
  %v84 = vrot.slane %v83, 4
  %v85 = vadd.f32 %v83, %v84
  %v86 = vrot.slane %v85, 2
  %v87 = vadd.f32 %v85, %v86
  %v88 = vrot.slane %v87, 1
  %v89 = vadd.f32 %v87, %v88
  %v90 = vstv %s24
  %v91 = vmul.f32 %v90, %v70
  %v92 = vsub.f32 %v89, %v91
  %93 = vst [vmem:[%s4] sm:$0x1] %v92
  // Predicated region
  $region18: #{entropy_forward.1} parent=0 // pred_check
    _
  $region19: #{entropy_forward.1} parent=0 // pred_check_branch
    %95 = sbr.rel (0) target = $region21
  $region20: #{entropy_forward.1} parent=0 // pred_region
    _
  $region21: #{entropy_forward.1} parent=0 // pred_fallthru
    _
  // Predicated region
  $region22: #{entropy_forward.1} parent=0 // pred_check
    _
  $region23: #{entropy_forward.1} parent=0 // pred_check_branch
    %97 = sbr.rel (0) target = $region25
  $region24: #{entropy_forward.1} parent=0 // pred_region
    _
  $region25: #{entropy_forward.1} parent=0 // pred_fallthru
    _

</llo_original>
